<compile_context>
chip_gen: v7x
topology: tpu7x:2x2x1
jax: 0.10.0
libtpu: 0.0.40
codegen_flags: <defaults>
</compile_context>

<pallas_src>
import functools
import math

import jax
import jax.numpy as jnp
from jax.experimental import pallas as pl
from jax.experimental.pallas import tpu as pltpu

LANES = 128
ROW_ALIGN = 32   # sublane granularity that stays layout-friendly for f32/bf16/int8


def _kl_kernel(p_ref, q_ref, out_ref, *, clamp, rows_total, block_rows):
    # Load this tile's logits (narrow dtypes are cast to f32 in-register).
    a = p_ref[...].astype(jnp.float32)
    b = q_ref[...].astype(jnp.float32)

    # eps-clip in logit space: clip(sigmoid(x), eps, 1-eps) == sigmoid(clip(x, -L, L)).
    a = jnp.clip(a, -clamp, clamp)
    b = jnp.clip(b, -clamp, clamp)

    # Logit-space Bernoulli KL with a single shared reciprocal (4 EUP ops / element):
    #   KL = sigmoid(a)*(a-b) + log((1+e^b) * r),   r = 1/(1+e^a)
    ea = jnp.exp(a)
    eb = jnp.exp(b)
    r = pl.reciprocal(1.0 + ea, approx=False)   # approx=True is a further EUP win if tol allows
    kl = (ea * r) * (a - b) + jnp.log((1.0 + eb) * r)

    pid = pl.program_id(0)
    last = pl.num_programs(0) - 1

    # Interior blocks: plain lane-dense partial sum, no mask work at all.
    @pl.when(pid < last)
    def _():
        out_ref[...] = jnp.sum(kl, axis=0, keepdims=True).reshape(1, 1, LANES)

    # Final block: may be a partial boundary block, so rows past the true row extent
    # are undefined and must be masked before the reduction.
    @pl.when(pid == last)
    def _():
        row = jax.lax.broadcasted_iota(jnp.int32, kl.shape, 0)
        valid = (pid * block_rows + row) < rows_total
        out_ref[...] = jnp.sum(jnp.where(valid, kl, 0.0),
                               axis=0, keepdims=True).reshape(1, 1, LANES)


def kl_divergence_loss(logits_P, logits_Q, eps=1e-7, block_rows=4096):
    """Pallas equivalent of KullbackLeiblerDivergenceLoss.forward. Returns a scalar."""
    assert logits_P.shape == logits_Q.shape, "P/Q logits must have the same shape"
    n_total = int(logits_P.size)
    assert n_total > 0

    rows = pl.cdiv(n_total, LANES)            # number of 128-lane rows
    padded_elems = rows * LANES

    def prep(x):
        flat = jnp.ravel(x)                   # zero-copy for contiguous inputs
        if padded_elems != n_total:
            # Lane-ragged sizes only: pad with < 128 zeros.  Zero logits give KL == 0
            # exactly, so the padding needs no per-element mask in the kernel.
            flat = jnp.pad(flat, (0, padded_elems - n_total))
        return flat.reshape(rows, LANES)

    p2d = prep(logits_P)
    q2d = prep(logits_Q)

    # Tile size: large to amortize the ~0.35 us per-grid-step pipeline overhead, capped
    # near rows/2 so there are >= 2 parallel blocks (v7x dual-TC sharding), and 32-row
    # aligned.  VMEM = 2 inputs x 2 buffers x tile = 8 MiB at the 4096-row f32 default.
    if rows <= ROW_ALIGN:
        eff_rows = rows                       # single block covering the whole array
    else:
        eff_rows = min(int(block_rows), rows)
        half = (rows // 2) // ROW_ALIGN * ROW_ALIGN
        if half > 0:
            eff_rows = min(eff_rows, half)
        eff_rows = max(ROW_ALIGN, (eff_rows // ROW_ALIGN) * ROW_ALIGN)
    num_blocks = pl.cdiv(rows, eff_rows)

    clamp = float(math.log((1.0 - eps) / eps))    # ~16.118 for eps=1e-7

    kernel = functools.partial(
        _kl_kernel, clamp=clamp, rows_total=rows, block_rows=eff_rows)

    in_bytes = 2 * padded_elems * jnp.dtype(logits_P.dtype).itemsize
    cost = pl.CostEstimate(
        flops=12 * padded_elems,
        transcendentals=4 * padded_elems,
        bytes_accessed=in_bytes + num_blocks * LANES * 4,
    )

    partials = pl.pallas_call(
        kernel,
        out_shape=jax.ShapeDtypeStruct((num_blocks, 1, LANES), jnp.float32),
        grid_spec=pltpu.PrefetchScalarGridSpec(
            num_scalar_prefetch=0,
            grid=(num_blocks,),
            in_specs=[
                pl.BlockSpec((eff_rows, LANES), lambda i: (i, 0)),
                pl.BlockSpec((eff_rows, LANES), lambda i: (i, 0)),
            ],
            out_specs=pl.BlockSpec((1, 1, LANES), lambda i: (i, 0, 0)),
        ),
        compiler_params=pltpu.CompilerParams(
            dimension_semantics=("parallel",),
        ),
        cost_estimate=cost,
    )(p2d, q2d)

    # Tiny final reduction over per-block lane-dense partials; mean over true count.
    return jnp.sum(partials) / jnp.float32(n_total)


def _reference(logits_P, logits_Q, eps=1e-7):
    P = jax.nn.sigmoid(logits_P.astype(jnp.float32))
    Q = jax.nn.sigmoid(logits_Q.astype(jnp.float32))
    P = jnp.clip(P, eps, 1.0 - eps)
    Q = jnp.clip(Q, eps, 1.0 - eps)
    return jnp.mean(P * jnp.log(P / Q) + (1.0 - P) * jnp.log((1.0 - P) / (1.0 - Q)))


if __name__ == "__main__":
    key = jax.random.PRNGKey(0)
    k1, k2 = jax.random.split(key)

    # Primary case: small NCHW-shaped logits (layout irrelevant: elementwise + mean).
    x_shape = (2, 4, 16, 16)
    logits_P = jax.random.normal(k1, x_shape, dtype=jnp.float32)
    logits_Q = jax.random.normal(k2, x_shape, dtype=jnp.float32)

    loss = jax.block_until_ready(kl_divergence_loss(logits_P, logits_Q))
    ref = _reference(logits_P, logits_Q)
    assert jnp.allclose(loss, ref, rtol=1e-5, atol=1e-6), (loss, ref)

    # Ragged case (non-multiple-of-128 element count) to exercise the lane-pad path.
    k3, k4 = jax.random.split(k2)
    y_shape = (3, 5, 7)
    lp2 = jax.random.normal(k3, y_shape, dtype=jnp.float32)
    lq2 = jax.random.normal(k4, y_shape, dtype=jnp.float32)
    loss2 = jax.block_until_ready(kl_divergence_loss(lp2, lq2))
    ref2 = _reference(lp2, lq2)
    assert jnp.allclose(loss2, ref2, rtol=1e-5, atol=1e-6), (loss2, ref2)

    # Multi-block case (exercises the pl.when interior/last-block split + partial block).
    k5, k6 = jax.random.split(k4)
    z_shape = (3, 40, 128)   # 15360 elems -> 120 rows -> eff_rows=32 -> 4 blocks (last partial)
    lp3 = jax.random.normal(k5, z_shape, dtype=jnp.float32)
    lq3 = jax.random.normal(k6, z_shape, dtype=jnp.float32)
    loss3 = jax.block_until_ready(kl_divergence_loss(lp3, lq3))
    ref3 = _reference(lp3, lq3)
    assert jnp.allclose(loss3, ref3, rtol=1e-5, atol=1e-6), (loss3, ref3)

    print("KERNEL_OK")
</pallas_src>

<mosaic_0001>
module attributes {stable_mosaic.version = 11 : i64} {
  func.func @_kl_kernel(%arg0: i32, %arg1: memref<16x128xf32, #tpu.memory_space<vmem>>, %arg2: memref<16x128xf32, #tpu.memory_space<vmem>>, %arg3: memref<1x1x128xf32, #tpu.memory_space<vmem>>) attributes {dimension_semantics = [#tpu.dimension_semantics<parallel>], iteration_bounds = array<i64: 1>, scalar_prefetch = 0 : i64, scratch_operands = 0 : i64, tpu.core_type = #tpu.core_type<tc>, window_params = [{transform_indices = @transform_0, window_bounds = array<i64: 16, 128>}, {transform_indices = @transform_1, window_bounds = array<i64: 16, 128>}, {transform_indices = @transform_2, window_bounds = array<i64: 1, 1, 128>}]} {
    %c0 = arith.constant 0 : index
    %c0_0 = arith.constant 0 : index
    %0 = vector.load %arg1[%c0, %c0_0] : memref<16x128xf32, #tpu.memory_space<vmem>>, vector<16x128xf32>
    %c0_1 = arith.constant 0 : index
    %c0_2 = arith.constant 0 : index
    %1 = vector.load %arg2[%c0_1, %c0_2] : memref<16x128xf32, #tpu.memory_space<vmem>>, vector<16x128xf32>
    %cst = arith.constant -16.1180954 : f32
    %cst_3 = arith.constant 16.1180954 : f32
    %2 = vector.broadcast %cst : f32 to vector<16x128xf32>
    %3 = arith.maximumf %2, %0 : vector<16x128xf32>
    %4 = vector.broadcast %cst_3 : f32 to vector<16x128xf32>
    %5 = arith.minimumf %4, %3 : vector<16x128xf32>
    %cst_4 = arith.constant -16.1180954 : f32
    %cst_5 = arith.constant 16.1180954 : f32
    %6 = vector.broadcast %cst_4 : f32 to vector<16x128xf32>
    %7 = arith.maximumf %6, %1 : vector<16x128xf32>
    %8 = vector.broadcast %cst_5 : f32 to vector<16x128xf32>
    %9 = arith.minimumf %8, %7 : vector<16x128xf32>
    %10 = math.exp %5 : vector<16x128xf32>
    %11 = math.exp %9 : vector<16x128xf32>
    %cst_6 = arith.constant 1.000000e+00 : f32
    %12 = vector.broadcast %cst_6 : f32 to vector<16x128xf32>
    %13 = arith.addf %12, %10 : vector<16x128xf32>
    %14 = tpu.reciprocal %13 : vector<16x128xf32> -> vector<16x128xf32>
    %15 = arith.mulf %10, %14 : vector<16x128xf32>
    %16 = arith.subf %5, %9 : vector<16x128xf32>
    %17 = arith.mulf %15, %16 : vector<16x128xf32>
    %cst_7 = arith.constant 1.000000e+00 : f32
    %18 = vector.broadcast %cst_7 : f32 to vector<16x128xf32>
    %19 = arith.addf %18, %11 : vector<16x128xf32>
    %20 = arith.mulf %19, %14 : vector<16x128xf32>
    %21 = math.log %20 : vector<16x128xf32>
    %22 = arith.addf %17, %21 : vector<16x128xf32>
    %c0_i32 = arith.constant 0 : i32
    %23 = arith.cmpi slt, %arg0, %c0_i32 : i32
    %24 = arith.extui %23 : i1 to i32
    %c0_i32_8 = arith.constant 0 : i32
    %25 = arith.cmpi ne, %24, %c0_i32_8 : i32
    scf.if %25 {
      %cst_11 = arith.constant dense<0.000000e+00> : vector<128xf32>
      %29 = vector.multi_reduction <add>, %22, %cst_11 [0] : vector<16x128xf32> to vector<128xf32>
      %30 = vector.shape_cast %29 : vector<128xf32> to vector<1x128xf32>
      %31 = vector.shape_cast %30 : vector<1x128xf32> to vector<1x1x128xf32>
      %c0_12 = arith.constant 0 : index
      %c0_13 = arith.constant 0 : index
      %c0_14 = arith.constant 0 : index
      %32 = vector.load %arg3[%c0_12, %c0_13, %c0_14] : memref<1x1x128xf32, #tpu.memory_space<vmem>>, vector<1x1x128xf32>
      tpu.vector_store %arg3[%c0_12, %c0_13, %c0_14], %31 {strides = array<i32>} : memref<1x1x128xf32, #tpu.memory_space<vmem>>, vector<1x1x128xf32>,
    } else {
    }
    %c0_i32_9 = arith.constant 0 : i32
    %26 = arith.cmpi eq, %arg0, %c0_i32_9 : i32
    %27 = arith.extui %26 : i1 to i32
    %c0_i32_10 = arith.constant 0 : i32
    %28 = arith.cmpi ne, %27, %c0_i32_10 : i32
    scf.if %28 {
      %29 = tpu.iota {dimensions = array<i32: 0>} : vector<16x128xi32>
      %c16_i32 = arith.constant 16 : i32
      %30 = arith.muli %arg0, %c16_i32 : i32
      %31 = vector.broadcast %30 : i32 to vector<16x128xi32>
      %32 = arith.addi %31, %29 : vector<16x128xi32>
      %c16_i32_11 = arith.constant 16 : i32
      %33 = vector.broadcast %c16_i32_11 : i32 to vector<16x128xi32>
      %34 = arith.cmpi slt, %32, %33 : vector<16x128xi32>
      %cst_12 = arith.constant 0.000000e+00 : f32
      %35 = vector.broadcast %cst_12 : f32 to vector<16x128xf32>
      %36 = arith.select %34, %22, %35 : vector<16x128xi1>, vector<16x128xf32>
      %cst_13 = arith.constant dense<0.000000e+00> : vector<128xf32>
      %37 = vector.multi_reduction <add>, %36, %cst_13 [0] : vector<16x128xf32> to vector<128xf32>
      %38 = vector.shape_cast %37 : vector<128xf32> to vector<1x128xf32>
      %39 = vector.shape_cast %38 : vector<1x128xf32> to vector<1x1x128xf32>
      %c0_14 = arith.constant 0 : index
      %c0_15 = arith.constant 0 : index
      %c0_16 = arith.constant 0 : index
      %40 = vector.load %arg3[%c0_14, %c0_15, %c0_16] : memref<1x1x128xf32, #tpu.memory_space<vmem>>, vector<1x1x128xf32>
      tpu.vector_store %arg3[%c0_14, %c0_15, %c0_16], %39 {strides = array<i32>} : memref<1x1x128xf32, #tpu.memory_space<vmem>>, vector<1x1x128xf32>,
    } else {
    }
    return
  }
  func.func @transform_0(%arg0: i32) -> (i32, i32) {
    %c0_i32 = arith.constant 0 : i32
    %c0_i32_0 = arith.constant 0 : i32
    return %arg0, %c0_i32 : i32, i32
  }
  func.func @transform_1(%arg0: i32) -> (i32, i32) {
    %c0_i32 = arith.constant 0 : i32
    %c0_i32_0 = arith.constant 0 : i32
    return %arg0, %c0_i32 : i32, i32
  }
  func.func @transform_2(%arg0: i32) -> (i32, i32, i32) {
    %c0_i32 = arith.constant 0 : i32
    %c0_i32_0 = arith.constant 0 : i32
    %c0_i32_1 = arith.constant 0 : i32
    return %arg0, %c0_i32, %c0_i32_0 : i32, i32, i32
  }
}

</mosaic_0001>

<llo_original>
// kernel: tpu_custom_call.1
$region0: #{tpu_custom_call.1}
  #allocation0 [shape = 'u32[]', space=smem, size = 0x4, offset = 0x4, fixed_abs, tag = 'smem constant byte address 0x4 - core index']
  #allocation1 [shape = 'u32[144,128]{1,0:T(1,128)}', space=vmem, size = 0x12000, scoped, tag = 'internal scratch']
  %s0 = inlined_call_operand.hbm [shape: f32[16,128], index: 0, kind: input, shape index: {}]
  %s1 = inlined_call_operand.hbm [shape: f32[16,128], index: 1, kind: input, shape index: {}]
  %s2 = inlined_call_operand.hbm [shape: f32[1,1,128], index: 2, kind: output, shape index: {}]
  %s3 = sld [smem:[#allocation0]]
  $region34: #{tpu_custom_call.1} parent=0
    _
  %s5 = ssub.s32 1, %s3
  %s6 = scalar_select 0, %s5, %s3
  $region1: #{tpu_custom_call.1} parent=0
    #allocation2 [shape = 'u8[8192]{0}', space=vmem, size = 0x2000, scoped, tag = 'input window, operand 0, single buffered']
    #allocation3 [shape = 's32[1]{0}', space=sflag, size = 0x4, scoped, tag = 'scoped memory for tpu_custom_call.1']
    #allocation4 [shape = 's32[1]{0}', space=sflag, size = 0x4, scoped, tag = 'scoped memory for tpu_custom_call.1']
    #allocation5 [shape = 'u8[8192]{0}', space=vmem, size = 0x2000, scoped, tag = 'input window, operand 1, single buffered']
    #allocation6 [shape = 's32[1]{0}', space=sflag, size = 0x4, scoped, tag = 'scoped memory for tpu_custom_call.1']
    #allocation7 [shape = 'u8[512]{0}', space=vmem, size = 0x400, scoped, tag = 'output window, operand 0, single buffered']
    %7 = vsyncpa [#allocation3], 0
    %8 = vsyncpa [#allocation6], 0
    %9 = vsyncpa [#allocation4], 0
    // Predicated region
    $region2: #{tpu_custom_call.1} parent=1 // pred_check
      _
    $region3: #{tpu_custom_call.1} parent=1 // pred_check_branch
      %11 = sbr.rel (0) target = $region5
    $region4: #{tpu_custom_call.1} parent=1 // pred_region
      %s13 = ssub.s32 256, 256
      %14 = vsyncadd [#allocation3], %s13
      %s15 = sshll.u32 [#allocation2], 4
      %s16 = int_to_ptr.vmem [resolvable:$true] %s15
      %21 = dma.hbm_to_vmem [thread:$0]  %s0, 256, %s16, [#allocation3], 128, 128, 8
    $region5: #{tpu_custom_call.1} parent=1 // pred_fallthru
      _
    // Predicated region
    $region6: #{tpu_custom_call.1} parent=1 // pred_check
      _
    $region7: #{tpu_custom_call.1} parent=1 // pred_check_branch
      %23 = sbr.rel (0) target = $region9
    $region8: #{tpu_custom_call.1} parent=1 // pred_region
      %s25 = ssub.s32 256, 256
      %26 = vsyncadd [#allocation6], %s25
      %s27 = sshll.u32 [#allocation5], 4
      %s28 = int_to_ptr.vmem [resolvable:$true] %s27
      %33 = dma.hbm_to_vmem [thread:$0]  %s1, 256, %s28, [#allocation6], 128, 128, 8
    $region9: #{tpu_custom_call.1} parent=1 // pred_fallthru
      _
    // Predicated region
    $region10: #{tpu_custom_call.1} parent=1 // pred_check
      _
    $region11: #{tpu_custom_call.1} parent=1 // pred_check_branch
      %35 = sbr.rel (0) target = $region13
    $region12: #{tpu_custom_call.1} parent=1 // pred_region
      %36 = dma.done [#allocation3], 256
    $region13: #{tpu_custom_call.1} parent=1 // pred_fallthru
      _
    // Predicated region
    $region14: #{tpu_custom_call.1} parent=1 // pred_check
      _
    $region15: #{tpu_custom_call.1} parent=1 // pred_check_branch
      %38 = sbr.rel (0) target = $region17
    $region16: #{tpu_custom_call.1} parent=1 // pred_region
      %39 = dma.done [#allocation6], 256
    $region17: #{tpu_custom_call.1} parent=1 // pred_fallthru
      _
    %v40 = vld [vmem:[#allocation2] sm:$0xff]
    %v41 = vld [vmem:[#allocation2 + $0x8] sm:$0xff]
    %v42 = vld [vmem:[#allocation5] sm:$0xff]
    %v43 = vld [vmem:[#allocation5 + $0x8] sm:$0xff]
    %v44 = vmax.f32 %v40, -16.118095
    %v45 = vmax.f32 %v41, -16.118095
    %v46 = vmin.f32 %v44, 16.118095
    %v47 = vmin.f32 %v45, 16.118095
    %v48 = vmax.f32 %v42, -16.118095
    %v49 = vmax.f32 %v43, -16.118095
    %v50 = vmin.f32 %v48, 16.118095
    %v51 = vmin.f32 %v49, 16.118095
    %v52 = vmul.f32 %v46, 1.442695
    %v53 = vpow.pop %v52
    %v54 = vmul.f32 %v47, 1.442695
    %v55 = vpow.pop %v54
    %v56 = vmul.f32 %v50, 1.442695
    %v57 = vpow.pop %v56
    %v58 = vmul.f32 %v51, 1.442695
    %v59 = vpow.pop %v58
    %v60 = vadd.f32 %v53, 1.0
    %v61 = vadd.f32 %v55, 1.0
    %v62 = vrcp.pop %v60
    %v63 = vrcp.pop %v61
    %v64 = vmul.f32 %v53, %v62
    %v65 = vmul.f32 %v55, %v63
    %v66 = vsub.f32 %v46, %v50
    %v67 = vsub.f32 %v47, %v51
    %v68 = vmul.f32 %v64, %v66
    %v69 = vmul.f32 %v65, %v67
    %v70 = vadd.f32 %v57, 1.0
    %v71 = vadd.f32 %v59, 1.0
    %v72 = vmul.f32 %v70, %v62
    %v73 = vmul.f32 %v71, %v63
    %v74 = vlog2.pop %v72
    %v75 = vmul.f32 %v74, 0.6931472
    %v76 = vlog2.pop %v73
    %v77 = vmul.f32 %v76, 0.6931472
    %v78 = vadd.f32 %v68, %v75
    %v79 = vadd.f32 %v69, %v77
    %p80 = scmp.lt.s32.totalorder 0, 0
    // Predicated region
    $region18: #{tpu_custom_call.1} parent=1 // pred_check
      %p81 = pneg %p80
    $region19: #{tpu_custom_call.1} parent=1 // pred_check_branch
      %83 = sbr.rel (%p81) target = $region21
    $region20: #{tpu_custom_call.1} parent=1 // pred_region
      %v84 = vadd.f32 %v78, %v79
      %v85 = vrot.slane %v84, 4
      %v86 = vadd.f32 %v84, %v85
      %v87 = vrot.slane %v86, 2
      %v88 = vadd.f32 %v86, %v87
      %v89 = vrot.slane %v88, 1
      %v90 = vadd.f32 %v88, %v89
      %91 = vst [vmem:[#allocation7] sm:$0x1] %v90
    $region21: #{tpu_custom_call.1} parent=1 // pred_fallthru
      _
    %p92 = scmp.eq.s32.totalorder 0, 0
    // Predicated region
    $region22: #{tpu_custom_call.1} parent=1 // pred_check
      %p93 = pneg %p92
    $region23: #{tpu_custom_call.1} parent=1 // pred_check_branch
      %95 = sbr.rel (%p93) target = $region25
    $region24: #{tpu_custom_call.1} parent=1 // pred_region
      %v96 = vlaneseq
      %v97 = vshrl.u32 %v96, 7
      %v98 = vadd.s32 %v97, 8
      %s99 = smul.u32 0, 16
      %v100 = vstv %s99
      %v101 = vadd.s32 %v100, %v97
      %v102 = vadd.s32 %v100, %v98
      %vm103 = vcmp.lt.s32.totalorder %v101, 16
      %vm104 = vcmp.lt.s32.totalorder %v102, 16
      %v105 = vsel %vm103, %v78, 0.0
      %v106 = vsel %vm104, %v79, 0.0
      %v107 = vadd.f32 %v105, %v106
      %v108 = vrot.slane %v107, 4
      %v109 = vadd.f32 %v107, %v108
      %v110 = vrot.slane %v109, 2
      %v111 = vadd.f32 %v109, %v110
      %v112 = vrot.slane %v111, 1
      %v113 = vadd.f32 %v111, %v112
      %114 = vst [vmem:[#allocation7] sm:$0x1] %v113
    $region25: #{tpu_custom_call.1} parent=1 // pred_fallthru
      _
    // Predicated region
    $region26: #{tpu_custom_call.1} parent=1 // pred_check
      _
    $region27: #{tpu_custom_call.1} parent=1 // pred_check_branch
      %116 = sbr.rel (0) target = $region29
    $region28: #{tpu_custom_call.1} parent=1 // pred_region
      %s118 = ssub.s32 16, 16
      %119 = vsyncadd [#allocation4], %s118
      %s121 = sshll.u32 [#allocation7], 4
      %s122 = int_to_ptr.vmem [resolvable:$true] %s121
      %124 = dma.vmem_to_hbm [thread:$0]  %s122, 16, %s2, [#allocation4]
    $region29: #{tpu_custom_call.1} parent=1 // pred_fallthru
      _
    // Predicated region
    $region30: #{tpu_custom_call.1} parent=1 // pred_check
      _
    $region31: #{tpu_custom_call.1} parent=1 // pred_check_branch
      %126 = sbr.rel (0) target = $region33
    $region32: #{tpu_custom_call.1} parent=1 // pred_region
      %127 = dma.done [#allocation4], 16
    $region33: #{tpu_custom_call.1} parent=1 // pred_fallthru
      _
    %128 = vsyncpa [#allocation3], 1
    %129 = vsyncpa [#allocation6], 1
    %130 = vsyncpa [#allocation4], 1

</llo_original>
